<compile_context>
chip_gen: v6e
topology: v6e:2x2x1
jax: 0.10.0
libtpu: 0.0.40
codegen_flags: <defaults>
</compile_context>

<pallas_src>
import jax
import jax.numpy as jnp
from jax.experimental import pallas as pl
from jax.experimental.pallas import tpu as pltpu


# Architecture constants from the PyTorch module.
FILTERS_1 = 64
FILTERS_2 = 32
FILTERS_3 = 32
BOTTLENECK = 32

C_PAD = 128          # lane-dense output width (num_classes padded to a full lane row)
NEG_BIG = -1e30      # bias for padded class columns -> exp() == 0 inside log_softmax


def _round_up(x, m):
    return ((x + m - 1) // m) * m


def _gcn_group_kernel(adj_ref, x_ref, pool_ref,
                      w1_ref, b1_ref, w2_ref, b2_ref, w3_ref, b3_ref,
                      wfc_ref, bfc_ref, wsc_ref, bsc_ref,
                      out_ref):
    """One group of G graphs per grid step.

    adj_ref : (G*N, G*N) block-diagonal normalized adjacency (matmul dtype)
    x_ref   : (G*N, F0)  stacked node features                (matmul dtype)
    pool_ref: (G, G*N)   per-graph mean-pooling matrix (1/N entries, f32)
    out_ref : (G, C_PAD) log-probabilities (true classes in the first C lanes)
    """
    adj = adj_ref[...]
    h = x_ref[...]

    def gcn_relu(h, w_ref, b_ref):
        # Feature transform for all G graphs at once: (G*N, Fin) @ (Fin, Fout).
        s = jnp.dot(h.astype(w_ref.dtype), w_ref[...],
                    preferred_element_type=jnp.float32)
        # Neighbourhood aggregation for all G graphs as ONE block-diagonal matmul.
        s = jnp.dot(adj, s.astype(adj.dtype),
                    preferred_element_type=jnp.float32) + b_ref[...]
        return jnp.maximum(s, 0.0)

    h = gcn_relu(h, w1_ref, b1_ref)          # (G*N, 64)
    # TODO(synk): dropout is identity in eval mode; training-mode dropout
    # (pltpu.prng_seed / prng_random_bits) intentionally not implemented.
    h = gcn_relu(h, w2_ref, b2_ref)          # (G*N, 32)
    h = gcn_relu(h, w3_ref, b3_ref)          # (G*N, 32)

    # Per-graph unweighted mean pooling as a tiny MXU matmul (no reshapes).
    pooled = jnp.dot(pool_ref[...], h, preferred_element_type=jnp.float32)   # (G, 32)

    # Batched FC head over the G graphs of this step.
    t = jnp.dot(pooled.astype(wfc_ref.dtype), wfc_ref[...],
                preferred_element_type=jnp.float32) + bfc_ref[...]
    t = jnp.maximum(t, 0.0)
    s = jnp.dot(t.astype(wsc_ref.dtype), wsc_ref[...],
                preferred_element_type=jnp.float32) + bsc_ref[...]            # (G, C_PAD)

    # Numerically-stable log_softmax along the lane axis; padded class columns
    # carry a -1e30 bias so they contribute exp(...) == 0.
    m = jnp.max(s, axis=-1, keepdims=True)
    z = s - m
    lse = jnp.log(jnp.sum(jnp.exp(z), axis=-1, keepdims=True))
    out_ref[...] = (z - lse).astype(out_ref.dtype)                            # (G, C_PAD)


def gcn_cn_v4_att_v2_forward(adj, features, params, *,
                             matmul_dtype=jnp.float32, rows_per_step=128):
    """Batched forward.

    adj:      (B, N, N) float32 normalized adjacency (with self loops)
    features: (B, N, F0) float32 node features
    params:   (W1, b1, W2, b2, W3, b3, Wfc, bfc, Wsc, bsc); biases shaped (1, F)
    returns:  (B, num_classes) float32 log-probabilities
    """
    B, N, _ = adj.shape
    F0 = features.shape[-1]
    w1, b1, w2, b2, w3, b3, wfc, bfc, wsc, bsc = params
    F1, F2, F3 = w1.shape[1], w2.shape[1], w3.shape[1]
    BN = wfc.shape[1]
    C = wsc.shape[-1]
    assert C <= C_PAD, "num_classes must fit in one padded lane row"

    op_bytes = jnp.dtype(matmul_dtype).itemsize

    # ---- choose G graphs per step: fill ~rows_per_step MXU rows, stay in VMEM ----
    G = max(1, rows_per_step // max(N, 1))
    G = min(G, _round_up(B, 8))                       # don't over-pad tiny batches
    while G > 1 and (2 * ((G * N) ** 2 + G * N * F0) * op_bytes
                     + 2 * G * C_PAD * 4) > 24 * 1024 * 1024:
        G = max(1, G // 2)                            # VMEM working-set budget
    # TODO(synk): very large single graphs (N*N bytes beyond the VMEM budget) need a
    # node-tiled streaming path (adj in (tm, N) stripes + resident accumulator).

    num_groups = -(-B // G)
    B_pad = num_groups * G
    GN = G * N

    pad = B_pad - B
    if pad:
        adj = jnp.concatenate([adj, jnp.zeros((pad, N, N), adj.dtype)], axis=0)
        features = jnp.concatenate(
            [features, jnp.zeros((pad, N, F0), features.dtype)], axis=0)

    # Block-diagonal adjacency per group: one MXU matmul aggregates all G graphs.
    adj_g = adj.astype(matmul_dtype).reshape(num_groups, G, N, N)
    eye_g = jnp.eye(G, dtype=matmul_dtype)
    adj_bd = jnp.einsum('gh,bgnm->bgnhm', eye_g, adj_g).reshape(num_groups, GN, GN)
    feats_g = features.astype(matmul_dtype).reshape(num_groups, GN, F0)

    # (G, G*N) mean-pooling matrix: row g has 1/N over graph g's node rows.
    pool_mat = jnp.kron(jnp.eye(G, dtype=jnp.float32),
                        jnp.ones((1, N), jnp.float32)) / float(N)

    # Matmul operands in matmul_dtype; biases stay f32 (added to f32 accumulators).
    w1c, w2c, w3c, wfcc = (w.astype(matmul_dtype) for w in (w1, w2, w3, wfc))
    b1f, b2f, b3f, bfcf = (b.astype(jnp.float32) for b in (b1, b2, b3, bfc))
    wsc_p = jnp.zeros((BN, C_PAD), matmul_dtype).at[:, :C].set(wsc.astype(matmul_dtype))
    bsc_p = jnp.full((1, C_PAD), NEG_BIG, jnp.float32).at[:, :C].set(
        bsc.astype(jnp.float32))

    # Advisory cost model (2*m*n*k per matmul).
    per_group_flops = 2 * (
        GN * F0 * F1 + GN * GN * F1
        + GN * F1 * F2 + GN * GN * F2
        + GN * F2 * F3 + GN * GN * F3
        + G * GN * F3
        + G * F3 * BN + G * BN * C_PAD)
    weight_bytes = 4 * sum(int(p.size) for p in params)
    per_group_bytes = op_bytes * (GN * GN + GN * F0) + 4 * G * C_PAD

    def group_block(shape):
        # Per-group block: leading group dim squeezed out; trailing dims = full
        # array dims, so the (8,128) divisibility constraint never bites.
        return pl.BlockSpec((None,) + shape, lambda g: (g,) + (0,) * len(shape))

    def shared_block(a):
        # Same block for every grid step -> weights stay resident in VMEM.
        return pl.BlockSpec(a.shape, lambda g: (0,) * a.ndim)

    out = pl.pallas_call(
        _gcn_group_kernel,
        out_shape=jax.ShapeDtypeStruct((num_groups, G, C_PAD), jnp.float32),
        grid=(num_groups,),
        in_specs=[
            group_block((GN, GN)),      # block-diagonal adjacency
            group_block((GN, F0)),      # stacked features
            shared_block(pool_mat),
            shared_block(w1c), shared_block(b1f),
            shared_block(w2c), shared_block(b2f),
            shared_block(w3c), shared_block(b3f),
            shared_block(wfcc), shared_block(bfcf),
            shared_block(wsc_p), shared_block(bsc_p),
        ],
        out_specs=group_block((G, C_PAD)),
        compiler_params=pltpu.CompilerParams(
            # Independent graph groups -> shard the grid across both TCs on v7x.
            dimension_semantics=("parallel",),
            vmem_limit_bytes=32 * 1024 * 1024,
        ),
        cost_estimate=pl.CostEstimate(
            flops=num_groups * per_group_flops,
            transcendentals=B_pad * (C_PAD + 1),
            bytes_accessed=num_groups * per_group_bytes + weight_bytes,
        ),
    )(adj_bd, feats_g, pool_mat,
      w1c, b1f, w2c, b2f, w3c, b3f, wfcc, bfcf, wsc_p, bsc_p)

    return out.reshape(B_pad, C_PAD)[:B, :C]


def _reference_forward(adj, feats, params):
    """Pure-JAX reference mirroring the PyTorch forward (single graph, full f32)."""
    w1, b1, w2, b2, w3, b3, wfc, bfc, wsc, bsc = params
    hi = jax.lax.Precision.HIGHEST

    def gcn(h, w, b):
        return jnp.dot(adj, jnp.dot(h, w, precision=hi), precision=hi) + b

    h = jax.nn.relu(gcn(feats, w1, b1))
    h = jax.nn.relu(gcn(h, w2, b2))
    h = jax.nn.relu(gcn(h, w3, b3))
    pooled = jnp.mean(h, axis=0, keepdims=True)           # torch.mean(dim=0).unsqueeze(0)
    s = jax.nn.relu(jnp.dot(pooled, wfc, precision=hi) + bfc)
    s = jnp.dot(s, wsc, precision=hi) + bsc
    return jax.nn.log_softmax(s, axis=-1)[0]              # (C,)


if __name__ == "__main__":
    key = jax.random.PRNGKey(0)
    B, N, F0, C = 4, 8, 16, 4   # graphs, nodes/graph, feature_dim_size, num_classes
    keys = jax.random.split(key, 12)

    # Random undirected graphs -> A + I, then Kipf normalization D^-1/2 (A+I) D^-1/2.
    raw = (jax.random.uniform(keys[0], (B, N, N)) > 0.5).astype(jnp.float32)
    a = jnp.maximum(raw, jnp.transpose(raw, (0, 2, 1)))
    a = jnp.minimum(a + jnp.eye(N, dtype=jnp.float32)[None], 1.0)
    dinv = 1.0 / jnp.sqrt(jnp.sum(a, axis=-1))
    adj = a * dinv[:, :, None] * dinv[:, None, :]

    features = jax.random.normal(keys[1], (B, N, F0), dtype=jnp.float32)

    def glorot(k, shape):
        bound = (6.0 / (shape[0] + shape[1])) ** 0.5
        return jax.random.uniform(k, shape, jnp.float32, -bound, bound)

    params = (
        glorot(keys[2], (F0, FILTERS_1)),
        0.1 * jax.random.normal(keys[3], (1, FILTERS_1), dtype=jnp.float32),
        glorot(keys[4], (FILTERS_1, FILTERS_2)),
        0.1 * jax.random.normal(keys[5], (1, FILTERS_2), dtype=jnp.float32),
        glorot(keys[6], (FILTERS_2, FILTERS_3)),
        0.1 * jax.random.normal(keys[7], (1, FILTERS_3), dtype=jnp.float32),
        glorot(keys[8], (FILTERS_3, BOTTLENECK)),
        0.1 * jax.random.normal(keys[9], (1, BOTTLENECK), dtype=jnp.float32),
        glorot(keys[10], (BOTTLENECK, C)),
        0.1 * jax.random.normal(keys[11], (1, C), dtype=jnp.float32),
    )

    ref = jax.vmap(_reference_forward, in_axes=(0, 0, None))(adj, features, params)

    # f32-operand path: tight agreement with the f32 reference.
    out = gcn_cn_v4_att_v2_forward(adj, features, params)
    out = jax.block_until_ready(out)
    assert out.shape == (B, C)
    assert jnp.allclose(out, ref, atol=5e-3, rtol=5e-3), "f32 kernel mismatch vs reference"
    assert jnp.allclose(jnp.sum(jnp.exp(out), axis=-1), 1.0, atol=1e-4)

    # bf16-operand path (f32 accumulation): looser tolerance vs the f32 reference.
    out_bf16 = jax.block_until_ready(
        gcn_cn_v4_att_v2_forward(adj, features, params, matmul_dtype=jnp.bfloat16))
    assert out_bf16.shape == (B, C)
    assert jnp.allclose(out_bf16, ref, atol=3e-1, rtol=1e-1), "bf16 kernel mismatch"
    assert jnp.allclose(jnp.sum(jnp.exp(out_bf16), axis=-1), 1.0, atol=1e-3)

    print("KERNEL_OK")
</pallas_src>

<mosaic_0001>
module attributes {stable_mosaic.version = 11 : i64} {
  func.func @_gcn_group_kernel(%arg0: i32, %arg1: memref<1x64x64xf32, #tpu.memory_space<vmem>>, %arg2: memref<1x64x16xf32, #tpu.memory_space<vmem>>, %arg3: memref<8x64xf32, #tpu.memory_space<vmem>>, %arg4: memref<16x64xf32, #tpu.memory_space<vmem>>, %arg5: memref<1x64xf32, #tpu.memory_space<vmem>>, %arg6: memref<64x32xf32, #tpu.memory_space<vmem>>, %arg7: memref<1x32xf32, #tpu.memory_space<vmem>>, %arg8: memref<32x32xf32, #tpu.memory_space<vmem>>, %arg9: memref<1x32xf32, #tpu.memory_space<vmem>>, %arg10: memref<32x32xf32, #tpu.memory_space<vmem>>, %arg11: memref<1x32xf32, #tpu.memory_space<vmem>>, %arg12: memref<32x128xf32, #tpu.memory_space<vmem>>, %arg13: memref<1x128xf32, #tpu.memory_space<vmem>>, %arg14: memref<1x8x128xf32, #tpu.memory_space<vmem>>) attributes {dimension_semantics = [#tpu.dimension_semantics<parallel>], iteration_bounds = array<i64: 1>, scalar_prefetch = 0 : i64, scratch_operands = 0 : i64, tpu.core_type = #tpu.core_type<tc>, window_params = [{transform_indices = @transform_0, window_bounds = array<i64: 1, 64, 64>}, {transform_indices = @transform_1, window_bounds = array<i64: 1, 64, 16>}, {pipeline_mode = #tpu.pipeline_mode<synchronous>, transform_indices = @transform_2, window_bounds = array<i64: 8, 64>}, {pipeline_mode = #tpu.pipeline_mode<synchronous>, transform_indices = @transform_3, window_bounds = array<i64: 16, 64>}, {pipeline_mode = #tpu.pipeline_mode<synchronous>, transform_indices = @transform_4, window_bounds = array<i64: 1, 64>}, {pipeline_mode = #tpu.pipeline_mode<synchronous>, transform_indices = @transform_5, window_bounds = array<i64: 64, 32>}, {pipeline_mode = #tpu.pipeline_mode<synchronous>, transform_indices = @transform_6, window_bounds = array<i64: 1, 32>}, {pipeline_mode = #tpu.pipeline_mode<synchronous>, transform_indices = @transform_7, window_bounds = array<i64: 32, 32>}, {pipeline_mode = #tpu.pipeline_mode<synchronous>, transform_indices = @transform_8, window_bounds = array<i64: 1, 32>}, {pipeline_mode = #tpu.pipeline_mode<synchronous>, transform_indices = @transform_9, window_bounds = array<i64: 32, 32>}, {pipeline_mode = #tpu.pipeline_mode<synchronous>, transform_indices = @transform_10, window_bounds = array<i64: 1, 32>}, {pipeline_mode = #tpu.pipeline_mode<synchronous>, transform_indices = @transform_11, window_bounds = array<i64: 32, 128>}, {pipeline_mode = #tpu.pipeline_mode<synchronous>, transform_indices = @transform_12, window_bounds = array<i64: 1, 128>}, {transform_indices = @transform_13, window_bounds = array<i64: 1, 8, 128>}]} {
    %c0 = arith.constant 0 : index
    %c0_0 = arith.constant 0 : index
    %c0_1 = arith.constant 0 : index
    %0 = vector.load %arg1[%c0, %c0_0, %c0_1] : memref<1x64x64xf32, #tpu.memory_space<vmem>>, vector<1x64x64xf32>
    %1 = vector.shape_cast %0 : vector<1x64x64xf32> to vector<64x64xf32>
    %c0_2 = arith.constant 0 : index
    %c0_3 = arith.constant 0 : index
    %c0_4 = arith.constant 0 : index
    %2 = vector.load %arg2[%c0_2, %c0_3, %c0_4] : memref<1x64x16xf32, #tpu.memory_space<vmem>>, vector<1x64x16xf32>
    %3 = vector.shape_cast %2 : vector<1x64x16xf32> to vector<64x16xf32>
    %c0_5 = arith.constant 0 : index
    %c0_6 = arith.constant 0 : index
    %4 = vector.load %arg4[%c0_5, %c0_6] : memref<16x64xf32, #tpu.memory_space<vmem>>, vector<16x64xf32>
    %cst = arith.constant dense<0.000000e+00> : vector<64x64xf32>
    %5 = tpu.matmul %3, %4, %cst {dimension_numbers = #tpu.dot_dimension_numbers<[1], [0], [0], [1], [0, 0, 1, 1], [], []>} : vector<64x16xf32>, vector<16x64xf32>, vector<64x64xf32> -> vector<64x64xf32>
    %cst_7 = arith.constant dense<0.000000e+00> : vector<64x64xf32>
    %6 = tpu.matmul %1, %5, %cst_7 {dimension_numbers = #tpu.dot_dimension_numbers<[1], [0], [0], [1], [0, 0, 1, 1], [], []>} : vector<64x64xf32>, vector<64x64xf32>, vector<64x64xf32> -> vector<64x64xf32>
    %c0_8 = arith.constant 0 : index
    %c0_9 = arith.constant 0 : index
    %7 = vector.load %arg5[%c0_8, %c0_9] : memref<1x64xf32, #tpu.memory_space<vmem>>, vector<1x64xf32>
    %8 = vector.broadcast %7 : vector<1x64xf32> to vector<64x64xf32>
    %9 = arith.addf %6, %8 : vector<64x64xf32>
    %cst_10 = arith.constant 0.000000e+00 : f32
    %10 = vector.broadcast %cst_10 : f32 to vector<64x64xf32>
    %11 = arith.maximumf %9, %10 : vector<64x64xf32>
    %c0_11 = arith.constant 0 : index
    %c0_12 = arith.constant 0 : index
    %12 = vector.load %arg6[%c0_11, %c0_12] : memref<64x32xf32, #tpu.memory_space<vmem>>, vector<64x32xf32>
    %cst_13 = arith.constant dense<0.000000e+00> : vector<64x32xf32>
    %13 = tpu.matmul %11, %12, %cst_13 {dimension_numbers = #tpu.dot_dimension_numbers<[1], [0], [0], [1], [0, 0, 1, 1], [], []>} : vector<64x64xf32>, vector<64x32xf32>, vector<64x32xf32> -> vector<64x32xf32>
    %cst_14 = arith.constant dense<0.000000e+00> : vector<64x32xf32>
    %14 = tpu.matmul %1, %13, %cst_14 {dimension_numbers = #tpu.dot_dimension_numbers<[1], [0], [0], [1], [0, 0, 1, 1], [], []>} : vector<64x64xf32>, vector<64x32xf32>, vector<64x32xf32> -> vector<64x32xf32>
    %c0_15 = arith.constant 0 : index
    %c0_16 = arith.constant 0 : index
    %15 = vector.load %arg7[%c0_15, %c0_16] : memref<1x32xf32, #tpu.memory_space<vmem>>, vector<1x32xf32>
    %16 = vector.broadcast %15 : vector<1x32xf32> to vector<64x32xf32>
    %17 = arith.addf %14, %16 : vector<64x32xf32>
    %cst_17 = arith.constant 0.000000e+00 : f32
    %18 = vector.broadcast %cst_17 : f32 to vector<64x32xf32>
    %19 = arith.maximumf %17, %18 : vector<64x32xf32>
    %c0_18 = arith.constant 0 : index
    %c0_19 = arith.constant 0 : index
    %20 = vector.load %arg8[%c0_18, %c0_19] : memref<32x32xf32, #tpu.memory_space<vmem>>, vector<32x32xf32>
    %cst_20 = arith.constant dense<0.000000e+00> : vector<64x32xf32>
    %21 = tpu.matmul %19, %20, %cst_20 {dimension_numbers = #tpu.dot_dimension_numbers<[1], [0], [0], [1], [0, 0, 1, 1], [], []>} : vector<64x32xf32>, vector<32x32xf32>, vector<64x32xf32> -> vector<64x32xf32>
    %cst_21 = arith.constant dense<0.000000e+00> : vector<64x32xf32>
    %22 = tpu.matmul %1, %21, %cst_21 {dimension_numbers = #tpu.dot_dimension_numbers<[1], [0], [0], [1], [0, 0, 1, 1], [], []>} : vector<64x64xf32>, vector<64x32xf32>, vector<64x32xf32> -> vector<64x32xf32>
    %c0_22 = arith.constant 0 : index
    %c0_23 = arith.constant 0 : index
    %23 = vector.load %arg9[%c0_22, %c0_23] : memref<1x32xf32, #tpu.memory_space<vmem>>, vector<1x32xf32>
    %24 = vector.broadcast %23 : vector<1x32xf32> to vector<64x32xf32>
    %25 = arith.addf %22, %24 : vector<64x32xf32>
    %cst_24 = arith.constant 0.000000e+00 : f32
    %26 = vector.broadcast %cst_24 : f32 to vector<64x32xf32>
    %27 = arith.maximumf %25, %26 : vector<64x32xf32>
    %c0_25 = arith.constant 0 : index
    %c0_26 = arith.constant 0 : index
    %28 = vector.load %arg3[%c0_25, %c0_26] : memref<8x64xf32, #tpu.memory_space<vmem>>, vector<8x64xf32>
    %cst_27 = arith.constant dense<0.000000e+00> : vector<8x32xf32>
    %29 = tpu.matmul %28, %27, %cst_27 {dimension_numbers = #tpu.dot_dimension_numbers<[1], [0], [0], [1], [0, 0, 1, 1], [], []>} : vector<8x64xf32>, vector<64x32xf32>, vector<8x32xf32> -> vector<8x32xf32>
    %c0_28 = arith.constant 0 : index
    %c0_29 = arith.constant 0 : index
    %30 = vector.load %arg10[%c0_28, %c0_29] : memref<32x32xf32, #tpu.memory_space<vmem>>, vector<32x32xf32>
    %cst_30 = arith.constant dense<0.000000e+00> : vector<8x32xf32>
    %31 = tpu.matmul %29, %30, %cst_30 {dimension_numbers = #tpu.dot_dimension_numbers<[1], [0], [0], [1], [0, 0, 1, 1], [], []>} : vector<8x32xf32>, vector<32x32xf32>, vector<8x32xf32> -> vector<8x32xf32>
    %c0_31 = arith.constant 0 : index
    %c0_32 = arith.constant 0 : index
    %32 = vector.load %arg11[%c0_31, %c0_32] : memref<1x32xf32, #tpu.memory_space<vmem>>, vector<1x32xf32>
    %33 = vector.broadcast %32 : vector<1x32xf32> to vector<8x32xf32>
    %34 = arith.addf %31, %33 : vector<8x32xf32>
    %cst_33 = arith.constant 0.000000e+00 : f32
    %35 = vector.broadcast %cst_33 : f32 to vector<8x32xf32>
    %36 = arith.maximumf %34, %35 : vector<8x32xf32>
    %c0_34 = arith.constant 0 : index
    %c0_35 = arith.constant 0 : index
    %37 = vector.load %arg12[%c0_34, %c0_35] : memref<32x128xf32, #tpu.memory_space<vmem>>, vector<32x128xf32>
    %cst_36 = arith.constant dense<0.000000e+00> : vector<8x128xf32>
    %38 = tpu.matmul %36, %37, %cst_36 {dimension_numbers = #tpu.dot_dimension_numbers<[1], [0], [0], [1], [0, 0, 1, 1], [], []>} : vector<8x32xf32>, vector<32x128xf32>, vector<8x128xf32> -> vector<8x128xf32>
    %c0_37 = arith.constant 0 : index
    %c0_38 = arith.constant 0 : index
    %39 = vector.load %arg13[%c0_37, %c0_38] : memref<1x128xf32, #tpu.memory_space<vmem>>, vector<1x128xf32>
    %40 = vector.broadcast %39 : vector<1x128xf32> to vector<8x128xf32>
    %41 = arith.addf %38, %40 : vector<8x128xf32>
    %cst_39 = arith.constant dense<0xFF800000> : vector<8xf32>
    %42 = vector.multi_reduction <maximumf>, %41, %cst_39 [1] : vector<8x128xf32> to vector<8xf32>
    %43 = vector.shape_cast %42 : vector<8xf32> to vector<8x1xf32>
    %44 = vector.broadcast %43 : vector<8x1xf32> to vector<8x128xf32>
    %45 = arith.subf %41, %44 : vector<8x128xf32>
    %46 = math.exp %45 : vector<8x128xf32>
    %cst_40 = arith.constant dense<0.000000e+00> : vector<8xf32>
    %47 = vector.multi_reduction <add>, %46, %cst_40 [1] : vector<8x128xf32> to vector<8xf32>
    %48 = vector.shape_cast %47 : vector<8xf32> to vector<8x1xf32>
    %49 = math.log %48 : vector<8x1xf32>
    %50 = vector.broadcast %49 : vector<8x1xf32> to vector<8x128xf32>
    %51 = arith.subf %45, %50 : vector<8x128xf32>
    %c0_41 = arith.constant 0 : index
    %c0_42 = arith.constant 0 : index
    %c0_43 = arith.constant 0 : index
    %52 = vector.load %arg14[%c0_41, %c0_42, %c0_43] : memref<1x8x128xf32, #tpu.memory_space<vmem>>, vector<1x8x128xf32>
    %53 = vector.shape_cast %52 : vector<1x8x128xf32> to vector<8x128xf32>
    %54 = vector.shape_cast %51 : vector<8x128xf32> to vector<1x8x128xf32>
    tpu.vector_store %arg14[%c0_41, %c0_42, %c0_43], %54 {strides = array<i32>} : memref<1x8x128xf32, #tpu.memory_space<vmem>>, vector<1x8x128xf32>,
    return
  }
  func.func @transform_0(%arg0: i32) -> (i32, i32, i32) {
    %c0_i32 = arith.constant 0 : i32
    %c0_i32_0 = arith.constant 0 : i32
    %c0_i32_1 = arith.constant 0 : i32
    return %arg0, %c0_i32, %c0_i32_0 : i32, i32, i32
  }
  func.func @transform_1(%arg0: i32) -> (i32, i32, i32) {
    %c0_i32 = arith.constant 0 : i32
    %c0_i32_0 = arith.constant 0 : i32
    %c0_i32_1 = arith.constant 0 : i32
    return %arg0, %c0_i32, %c0_i32_0 : i32, i32, i32
  }
  func.func @transform_2(%arg0: i32) -> (i32, i32) {
    %c0_i32 = arith.constant 0 : i32
    %c0_i32_0 = arith.constant 0 : i32
    %c0_i32_1 = arith.constant 0 : i32
    return %c0_i32, %c0_i32_0 : i32, i32
  }
  func.func @transform_3(%arg0: i32) -> (i32, i32) {
    %c0_i32 = arith.constant 0 : i32
    %c0_i32_0 = arith.constant 0 : i32
    %c0_i32_1 = arith.constant 0 : i32
    return %c0_i32, %c0_i32_0 : i32, i32
  }
  func.func @transform_4(%arg0: i32) -> (i32, i32) {
    %c0_i32 = arith.constant 0 : i32
    %c0_i32_0 = arith.constant 0 : i32
    %c0_i32_1 = arith.constant 0 : i32
    return %c0_i32, %c0_i32_0 : i32, i32
  }
  func.func @transform_5(%arg0: i32) -> (i32, i32) {
    %c0_i32 = arith.constant 0 : i32
    %c0_i32_0 = arith.constant 0 : i32
    %c0_i32_1 = arith.constant 0 : i32
    return %c0_i32, %c0_i32_0 : i32, i32
  }
  func.func @transform_6(%arg0: i32) -> (i32, i32) {
    %c0_i32 = arith.constant 0 : i32
    %c0_i32_0 = arith.constant 0 : i32
    %c0_i32_1 = arith.constant 0 : i32
    return %c0_i32, %c0_i32_0 : i32, i32
  }
  func.func @transform_7(%arg0: i32) -> (i32, i32) {
    %c0_i32 = arith.constant 0 : i32
    %c0_i32_0 = arith.constant 0 : i32
    %c0_i32_1 = arith.constant 0 : i32
    return %c0_i32, %c0_i32_0 : i32, i32
  }
  func.func @transform_8(%arg0: i32) -> (i32, i32) {
    %c0_i32 = arith.constant 0 : i32
    %c0_i32_0 = arith.constant 0 : i32
    %c0_i32_1 = arith.constant 0 : i32
    return %c0_i32, %c0_i32_0 : i32, i32
  }
  func.func @transform_9(%arg0: i32) -> (i32, i32) {
    %c0_i32 = arith.constant 0 : i32
    %c0_i32_0 = arith.constant 0 : i32
    %c0_i32_1 = arith.constant 0 : i32
    return %c0_i32, %c0_i32_0 : i32, i32
  }
  func.func @transform_10(%arg0: i32) -> (i32, i32) {
    %c0_i32 = arith.constant 0 : i32
    %c0_i32_0 = arith.constant 0 : i32
    %c0_i32_1 = arith.constant 0 : i32
    return %c0_i32, %c0_i32_0 : i32, i32
  }
  func.func @transform_11(%arg0: i32) -> (i32, i32) {
    %c0_i32 = arith.constant 0 : i32
    %c0_i32_0 = arith.constant 0 : i32
    %c0_i32_1 = arith.constant 0 : i32
    return %c0_i32, %c0_i32_0 : i32, i32
  }
  func.func @transform_12(%arg0: i32) -> (i32, i32) {
    %c0_i32 = arith.constant 0 : i32
    %c0_i32_0 = arith.constant 0 : i32
    %c0_i32_1 = arith.constant 0 : i32
    return %c0_i32, %c0_i32_0 : i32, i32
  }
  func.func @transform_13(%arg0: i32) -> (i32, i32, i32) {
    %c0_i32 = arith.constant 0 : i32
    %c0_i32_0 = arith.constant 0 : i32
    %c0_i32_1 = arith.constant 0 : i32
    return %arg0, %c0_i32, %c0_i32_0 : i32, i32, i32
  }
}

</mosaic_0001>

<llo_original>
// kernel: tpu_custom_call.1
$region0: #{tpu_custom_call.1}
  #allocation0 [shape = 'u32[]', space=smem, size = 0x4, offset = 0x4, fixed_abs, tag = 'smem constant byte address 0x4 - core index']
  #allocation1 [shape = 'u32[144,128]{1,0:T(1,128)}', space=vmem, size = 0x12000, scoped, tag = 'internal scratch']
  %s0 = inlined_call_operand.vmem [shape: f32[1,64,64], index: 0, kind: input, shape index: {}]
  %s1 = inlined_call_operand.vmem [shape: f32[1,64,16], index: 1, kind: input, shape index: {}]
  %s2 = inlined_call_operand.hbm [shape: f32[8,64], index: 2, kind: input, shape index: {}]
  %s3 = inlined_call_operand.vmem [shape: f32[16,64], index: 3, kind: input, shape index: {}]
  %s4 = inlined_call_operand.vmem [shape: f32[1,64], index: 4, kind: input, shape index: {}]
  %s5 = inlined_call_operand.vmem [shape: f32[64,32], index: 5, kind: input, shape index: {}]
  %s6 = inlined_call_operand.vmem [shape: f32[1,32], index: 6, kind: input, shape index: {}]
  %s7 = inlined_call_operand.vmem [shape: f32[32,32], index: 7, kind: input, shape index: {}]
  %s8 = inlined_call_operand.vmem [shape: f32[1,32], index: 8, kind: input, shape index: {}]
  %s9 = inlined_call_operand.vmem [shape: f32[32,32], index: 9, kind: input, shape index: {}]
  %s10 = inlined_call_operand.vmem [shape: f32[1,32], index: 10, kind: input, shape index: {}]
  %s11 = inlined_call_operand.vmem [shape: f32[32,128], index: 11, kind: input, shape index: {}]
  %s12 = inlined_call_operand.vmem [shape: f32[1,128], index: 12, kind: input, shape index: {}]
  %s13 = inlined_call_operand.hbm [shape: f32[1,8,128], index: 13, kind: output, shape index: {}]
  %s14 = sld [smem:[#allocation0]]
  $region66: #{tpu_custom_call.1} parent=0
    _
  %s16 = ssub.s32 1, %s14
  %s17 = scalar_select 0, %s16, %s14
  $region1: #{tpu_custom_call.1} parent=0
    #allocation2 [shape = 'u8[4096]{0}', space=vmem, size = 0x1000, scoped, tag = 'input window, operand 2, single buffered']
    #allocation3 [shape = 's32[1]{0}', space=sflag, size = 0x4, scoped, tag = 'scoped memory for tpu_custom_call.1']
    #allocation4 [shape = 's32[1]{0}', space=sflag, size = 0x4, scoped, tag = 'scoped memory for tpu_custom_call.1']
    #allocation5 [shape = 'u8[4096]{0}', space=vmem, size = 0x1000, scoped, tag = 'output window, operand 0, single buffered']
    %18 = vsyncpa [#allocation3], 0
    %19 = vsyncpa [#allocation4], 0
    // Predicated region
    $region2: #{tpu_custom_call.1} parent=1 // pred_check
      _
    $region3: #{tpu_custom_call.1} parent=1 // pred_check_branch
      %21 = sbr.rel (0) target = $region5
    $region4: #{tpu_custom_call.1} parent=1 // pred_region
      _
    $region5: #{tpu_custom_call.1} parent=1 // pred_fallthru
      _
    // Predicated region
    $region6: #{tpu_custom_call.1} parent=1 // pred_check
      _
    $region7: #{tpu_custom_call.1} parent=1 // pred_check_branch
      %23 = sbr.rel (0) target = $region9
    $region8: #{tpu_custom_call.1} parent=1 // pred_region
      _
    $region9: #{tpu_custom_call.1} parent=1 // pred_fallthru
      _
    // Predicated region
    $region10: #{tpu_custom_call.1} parent=1 // pred_check
      _
    $region11: #{tpu_custom_call.1} parent=1 // pred_check_branch
      %25 = sbr.rel (0) target = $region13
    $region12: #{tpu_custom_call.1} parent=1 // pred_region
      %s27 = ssub.s32 128, 128
      %28 = vsyncadd [#allocation3], %s27
      %s30 = sshll.u32 [#allocation2], 4
      %s31 = int_to_ptr.vmem [resolvable:$true] %s30
      %33 = dma.hbm_to_vmem [thread:$0]  %s2, 128, %s31, [#allocation3]
    $region13: #{tpu_custom_call.1} parent=1 // pred_fallthru
      _
    // Predicated region
    $region14: #{tpu_custom_call.1} parent=1 // pred_check
      _
    $region15: #{tpu_custom_call.1} parent=1 // pred_check_branch
      %35 = sbr.rel (0) target = $region17
    $region16: #{tpu_custom_call.1} parent=1 // pred_region
      _
    $region17: #{tpu_custom_call.1} parent=1 // pred_fallthru
      _
    // Predicated region
    $region18: #{tpu_custom_call.1} parent=1 // pred_check
      _
    $region19: #{tpu_custom_call.1} parent=1 // pred_check_branch
      %37 = sbr.rel (0) target = $region21
    $region20: #{tpu_custom_call.1} parent=1 // pred_region
      _
    $region21: #{tpu_custom_call.1} parent=1 // pred_fallthru
      _
    // Predicated region
    $region22: #{tpu_custom_call.1} parent=1 // pred_check
      _
    $region23: #{tpu_custom_call.1} parent=1 // pred_check_branch
      %39 = sbr.rel (0) target = $region25
    $region24: #{tpu_custom_call.1} parent=1 // pred_region
      _
    $region25: #{tpu_custom_call.1} parent=1 // pred_fallthru
      _
    // Predicated region
    $region26: #{tpu_custom_call.1} parent=1 // pred_check
      _
    $region27: #{tpu_custom_call.1} parent=1 // pred_check_branch
      %41 = sbr.rel (0) target = $region29
    $region28: #{tpu_custom_call.1} parent=1 // pred_region
      _
    $region29: #{tpu_custom_call.1} parent=1 // pred_fallthru
      _
    // Predicated region
    $region30: #{tpu_custom_call.1} parent=1 // pred_check
      _
    $region31: #{tpu_custom_call.1} parent=1 // pred_check_branch
      %43 = sbr.rel (0) target = $region33
    $region32: #{tpu_custom_call.1} parent=1 // pred_region
      _
    $region33: #{tpu_custom_call.1} parent=1 // pred_fallthru
      _
    // Predicated region
    $region34: #{tpu_custom_call.1} parent=1 // pred_check
      _
    $region35: #{tpu_custom_call.1} parent=1 // pred_check_branch
      %45 = sbr.rel (0) target = $region37
    $region36: #{tpu_custom_call.1} parent=1 // pred_region
      _
    $region37: #{tpu_custom_call.1} parent=1 // pred_fallthru
      _
    // Predicated region
    $region38: #{tpu_custom_call.1} parent=1 // pred_check
      _
    $region39: #{tpu_custom_call.1} parent=1 // pred_check_branch
      %47 = sbr.rel (0) target = $region41
    $region40: #{tpu_custom_call.1} parent=1 // pred_region
      _
    $region41: #{tpu_custom_call.1} parent=1 // pred_fallthru
      _
    // Predicated region
    $region42: #{tpu_custom_call.1} parent=1 // pred_check
      _
    $region43: #{tpu_custom_call.1} parent=1 // pred_check_branch
      %49 = sbr.rel (0) target = $region45
    $region44: #{tpu_custom_call.1} parent=1 // pred_region
      _
    $region45: #{tpu_custom_call.1} parent=1 // pred_fallthru
      _
    // Predicated region
    $region46: #{tpu_custom_call.1} parent=1 // pred_check
      _
    $region47: #{tpu_custom_call.1} parent=1 // pred_check_branch
      %51 = sbr.rel (0) target = $region49
    $region48: #{tpu_custom_call.1} parent=1 // pred_region
      _
    $region49: #{tpu_custom_call.1} parent=1 // pred_fallthru
      _
    // Predicated region
    $region50: #{tpu_custom_call.1} parent=1 // pred_check
      _
    $region51: #{tpu_custom_call.1} parent=1 // pred_check_branch
      %53 = sbr.rel (0) target = $region53
    $region52: #{tpu_custom_call.1} parent=1 // pred_region
      _
    $region53: #{tpu_custom_call.1} parent=1 // pred_fallthru
      _
    // Predicated region
    $region54: #{tpu_custom_call.1} parent=1 // pred_check
      _
    $region55: #{tpu_custom_call.1} parent=1 // pred_check_branch
      %55 = sbr.rel (0) target = $region57
    $region56: #{tpu_custom_call.1} parent=1 // pred_region
      %56 = dma.done [#allocation3], 128
    $region57: #{tpu_custom_call.1} parent=1 // pred_fallthru
      _
    %v57 = vld [vmem:[%s0] sm:$0xff]
    %v58 = vld [vmem:[%s0 + $0x8] sm:$0xff]
    %v59 = vld [vmem:[%s0 + $0x10] sm:$0xff]
    %v60 = vld [vmem:[%s0 + $0x18] sm:$0xff]
    %v61 = vld [vmem:[%s0 + $0x20] sm:$0xff]
    %v62 = vld [vmem:[%s0 + $0x28] sm:$0xff]
    %v63 = vld [vmem:[%s0 + $0x30] sm:$0xff]
    %v64 = vld [vmem:[%s0 + $0x38] sm:$0xff]
    %v65 = vld [vmem:[%s1] sm:$0xff]
    %v66 = vld [vmem:[%s1 + $0x8] sm:$0xff]
    %v67 = vld [vmem:[%s1 + $0x10] sm:$0xff]
    %v68 = vld [vmem:[%s1 + $0x18] sm:$0xff]
    %v69 = vld [vmem:[%s1 + $0x20] sm:$0xff]
    %v70 = vld [vmem:[%s1 + $0x28] sm:$0xff]
    %v71 = vld [vmem:[%s1 + $0x30] sm:$0xff]
    %v72 = vld [vmem:[%s1 + $0x38] sm:$0xff]
    %v73 = vld [vmem:[%s3] sm:$0xff]
    %v74 = vld [vmem:[%s3 + $0x8] sm:$0xff]
    %vm75 = vcmask 130048
    %v77 = vsel %vm75, %v65, 0
    %v80 = vsel %vm75, %v66, 0
    %v83 = vsel %vm75, %v67, 0
    %v86 = vsel %vm75, %v68, 0
    %v89 = vsel %vm75, %v69, 0
    %v92 = vsel %vm75, %v70, 0
    %v95 = vsel %vm75, %v71, 0
    %v98 = vsel %vm75, %v72, 0
    %100 = vmatprep.subr.mxu0 0.0
    %101 = vmatpush1.msra.mxu0 0.0
    %102 = vmatprep.subr.mxu0 0.0
    %103 = vmatpush1.msra.mxu0 0.0
    %104 = vmatprep.subr.mxu0 0.0
    %105 = vmatpush1.msra.mxu0 0.0
    %106 = vmatprep.subr.mxu0 0.0
    %107 = vmatpush1.msra.mxu0 0.0
    %108 = vmatprep.subr.mxu0 0.0
    %109 = vmatpush1.msra.mxu0 0.0
    %110 = vmatprep.subr.mxu0 0.0
    %111 = vmatpush1.msra.mxu0 0.0
    %112 = vmatprep.subr.mxu0 0.0
    %113 = vmatpush1.msra.mxu0 0.0
    %114 = vmatprep.subr.mxu0 0.0
    %115 = vmatpush1.msra.mxu0 0.0
    %116 = vmatprep.subr.mxu0 0.0
    %117 = vmatpush1.msra.mxu0 0.0
    %118 = vmatprep.subr.mxu0 0.0
    %119 = vmatpush1.msra.mxu0 0.0
    %120 = vmatprep.subr.mxu0 0.0
    %121 = vmatpush1.msra.mxu0 0.0
    %122 = vmatprep.subr.mxu0 0.0
    %123 = vmatpush1.msra.mxu0 0.0
    %124 = vmatprep.subr.mxu0 0.0
    %125 = vmatpush1.msra.mxu0 0.0
    %126 = vmatprep.subr.mxu0 0.0
    %127 = vmatpush1.msra.mxu0 0.0
    %128 = vmatprep.subr.mxu0 0.0
    %129 = vmatpush1.msra.mxu0 %v74
    %130 = vmatprep.subr.mxu0 0.0
    %131 = vmatpush1.msra.mxu0 %v73
    %132 = vmatprep.subr.mxu0 0.0
    %133 = vmatpush2.msra.mxu0 0.0
    %134 = vmatprep.subr.mxu0 0.0
    %135 = vmatpush2.msra.mxu0 0.0
    %136 = vmatprep.subr.mxu0 0.0
    %137 = vmatpush2.msra.mxu0 0.0
    %138 = vmatprep.subr.mxu0 0.0
    %139 = vmatpush2.msra.mxu0 0.0
    %140 = vmatprep.subr.mxu0 0.0
    %141 = vmatpush2.msra.mxu0 0.0
    %142 = vmatprep.subr.mxu0 0.0
    %143 = vmatpush2.msra.mxu0 0.0
    %144 = vmatprep.subr.mxu0 0.0
    %145 = vmatpush2.msra.mxu0 0.0
    %146 = vmatprep.subr.mxu0 0.0
    %147 = vmatpush2.msra.mxu0 0.0
    %148 = vmatprep.subr.mxu0 0.0
    %149 = vmatpush2.msra.mxu0 0.0
    %150 = vmatprep.subr.mxu0 0.0
    %151 = vmatpush2.msra.mxu0 0.0
    %152 = vmatprep.subr.mxu0 0.0
    %153 = vmatpush2.msra.mxu0 0.0
    %154 = vmatprep.subr.mxu0 0.0
    %155 = vmatpush2.msra.mxu0 0.0
    %156 = vmatprep.subr.mxu0 0.0
    %157 = vmatpush2.msra.mxu0 0.0
    %158 = vmatprep.subr.mxu0 0.0
    %159 = vmatpush2.msra.mxu0 0.0
    %160 = vmatprep.subr.mxu0 0.0
    %161 = vmatpush2.msra.mxu0 0.0
    %162 = vmatprep.subr.mxu0 0.0
    %163 = vmatpush2.msra.mxu0 0.0
    %164 = vmatprep.mubr.f32.mxu0 0.0
    %165 = vmatmul.mubr.f32.gmra.mxu0 %v77
    %v166 = vpop.f32.mrf.mxu0
    %v167 = vadd.f32 0.0, %v166
    %v168 = vpop.f32.mrf.mxu0
    %169 = vmatprep.mubr.f32.mxu0 0.0
    %170 = vmatmul.mubr.f32.gmra.mxu0 %v80
    %v171 = vpop.f32.mrf.mxu0
    %v172 = vadd.f32 0.0, %v171
    %v173 = vpop.f32.mrf.mxu0
    %174 = vmatprep.mubr.f32.mxu0 0.0
    %175 = vmatmul.mubr.f32.gmra.mxu0 %v83
    %v176 = vpop.f32.mrf.mxu0
    %v177 = vadd.f32 0.0, %v176
    %v178 = vpop.f32.mrf.mxu0
    %179 = vmatprep.mubr.f32.mxu0 0.0
    %180 = vmatmul.mubr.f32.gmra.mxu0 %v86
    %v181 = vpop.f32.mrf.mxu0
    %v182 = vadd.f32 0.0, %v181
    %v183 = vpop.f32.mrf.mxu0
    %184 = vmatprep.mubr.f32.mxu0 0.0
    %185 = vmatmul.mubr.f32.gmra.mxu0 %v89
    %v186 = vpop.f32.mrf.mxu0
    %v187 = vadd.f32 0.0, %v186
    %v188 = vpop.f32.mrf.mxu0
    %189 = vmatprep.mubr.f32.mxu0 0.0
    %190 = vmatmul.mubr.f32.gmra.mxu0 %v92
    %v191 = vpop.f32.mrf.mxu0
    %v192 = vadd.f32 0.0, %v191
    %v193 = vpop.f32.mrf.mxu0
    %194 = vmatprep.mubr.f32.mxu0 0.0
    %195 = vmatmul.mubr.f32.gmra.mxu0 %v95
    %v196 = vpop.f32.mrf.mxu0
    %v197 = vadd.f32 0.0, %v196
    %v198 = vpop.f32.mrf.mxu0
    %199 = vmatprep.mubr.f32.mxu0 0.0
    %200 = vmatmul.mubr.f32.gmra.mxu0 %v98
    %v201 = vpop.f32.mrf.mxu0
    %v202 = vadd.f32 0.0, %v201
    %v203 = vpop.f32.mrf.mxu0
    %204 = vdwg.mxu0
    %v205 = vld [vmem:[%s4] sm:$0x1]
    %v207 = vlaneseq
    %v208 = vshrl.u32 %v207, 7
    %v209 = vsub.s32 0, %v208
    %v210 = vrot.slane %v205, %v209
    %vm212 = vcmask 523264
    %v214 = vsel %vm212, %v57, 0
    %v217 = vsel %vm212, %v58, 0
    %v220 = vsel %vm212, %v59, 0
    %v223 = vsel %vm212, %v60, 0
    %v226 = vsel %vm212, %v61, 0
    %v229 = vsel %vm212, %v62, 0
    %v232 = vsel %vm212, %v63, 0
    %v235 = vsel %vm212, %v64, 0
    %237 = vmatprep.subr.mxu0 0.0
    %238 = vmatpush1.msra.mxu0 0.0
    %239 = vmatprep.subr.mxu0 0.0
    %240 = vmatpush1.msra.mxu0 0.0
    %241 = vmatprep.subr.mxu0 0.0
    %242 = vmatpush1.msra.mxu0 0.0
    %243 = vmatprep.subr.mxu0 0.0
    %244 = vmatpush1.msra.mxu0 0.0
    %245 = vmatprep.subr.mxu0 0.0
    %246 = vmatpush1.msra.mxu0 0.0
    %247 = vmatprep.subr.mxu0 0.0
    %248 = vmatpush1.msra.mxu0 0.0
    %249 = vmatprep.subr.mxu0 0.0
    %250 = vmatpush1.msra.mxu0 0.0
    %251 = vmatprep.subr.mxu0 0.0
    %252 = vmatpush1.msra.mxu0 0.0
    %253 = vmatprep.subr.mxu0 0.0
    %254 = vmatpush1.msra.mxu0 %v202
    %255 = vmatprep.subr.mxu0 0.0
    %256 = vmatpush1.msra.mxu0 %v197
    %257 = vmatprep.subr.mxu0 0.0
    %258 = vmatpush1.msra.mxu0 %v192
    %259 = vmatprep.subr.mxu0 0.0
    %260 = vmatpush1.msra.mxu0 %v187
    %261 = vmatprep.subr.mxu0 0.0
    %262 = vmatpush1.msra.mxu0 %v182
    %263 = vmatprep.subr.mxu0 0.0
    %264 = vmatpush1.msra.mxu0 %v177
    %265 = vmatprep.subr.mxu0 0.0
    %266 = vmatpush1.msra.mxu0 %v172
    %267 = vmatprep.subr.mxu0 0.0
    %268 = vmatpush1.msra.mxu0 %v167
    %269 = vmatprep.subr.mxu0 0.0
    %270 = vmatpush2.msra.mxu0 0.0
    %271 = vmatprep.subr.mxu0 0.0
    %272 = vmatpush2.msra.mxu0 0.0
    %273 = vmatprep.subr.mxu0 0.0
    %274 = vmatpush2.msra.mxu0 0.0
    %275 = vmatprep.subr.mxu0 0.0
    %276 = vmatpush2.msra.mxu0 0.0
    %277 = vmatprep.subr.mxu0 0.0
    %278 = vmatpush2.msra.mxu0 0.0
    %279 = vmatprep.subr.mxu0 0.0
    %280 = vmatpush2.msra.mxu0 0.0
    %281 = vmatprep.subr.mxu0 0.0
    %282 = vmatpush2.msra.mxu0 0.0
    %283 = vmatprep.subr.mxu0 0.0
    %284 = vmatpush2.msra.mxu0 0.0
    %285 = vmatprep.subr.mxu0 0.0
    %286 = vmatpush2.msra.mxu0 0.0
    %287 = vmatprep.subr.mxu0 0.0
    %288 = vmatpush2.msra.mxu0 0.0
    %289 = vmatprep.subr.mxu0 0.0
    %290 = vmatpush2.msra.mxu0 0.0
    %291 = vmatprep.subr.mxu0 0.0
    %292 = vmatpush2.msra.mxu0 0.0
    %293 = vmatprep.subr.mxu0 0.0
    %294 = vmatpush2.msra.mxu0 0.0
    %295 = vmatprep.subr.mxu0 0.0
    %296 = vmatpush2.msra.mxu0 0.0
    %297 = vmatprep.subr.mxu0 0.0
    %298 = vmatpush2.msra.mxu0 0.0
    %299 = vmatprep.subr.mxu0 0.0
    %300 = vmatpush2.msra.mxu0 0.0
    %301 = vmatprep.mubr.f32.mxu0 0.0
    %302 = vmatmul.mubr.f32.gmra.mxu0 %v214
    %v303 = vpop.f32.mrf.mxu0
    %v304 = vadd.f32 %v210, %v303
    %v305 = vpop.f32.mrf.mxu0
    %306 = vmatprep.mubr.f32.mxu0 0.0
    %307 = vmatmul.mubr.f32.gmra.mxu0 %v217
    %v308 = vpop.f32.mrf.mxu0
    %v309 = vadd.f32 %v210, %v308
    %v310 = vpop.f32.mrf.mxu0
    %311 = vmatprep.mubr.f32.mxu0 0.0
    %312 = vmatmul.mubr.f32.gmra.mxu0 %v220
    %v313 = vpop.f32.mrf.mxu0
    %v314 = vadd.f32 %v210, %v313
    %v315 = vpop.f32.mrf.mxu0
    %316 = vmatprep.mubr.f32.mxu0 0.0
    %317 = vmatmul.mubr.f32.gmra.mxu0 %v223
    %v318 = vpop.f32.mrf.mxu0
    %v319 = vadd.f32 %v210, %v318
    %v320 = vpop.f32.mrf.mxu0
    %321 = vmatprep.mubr.f32.mxu0 0.0
    %322 = vmatmul.mubr.f32.gmra.mxu0 %v226
    %v323 = vpop.f32.mrf.mxu0
    %v324 = vadd.f32 %v210, %v323
    %v325 = vpop.f32.mrf.mxu0
    %326 = vmatprep.mubr.f32.mxu0 0.0
    %327 = vmatmul.mubr.f32.gmra.mxu0 %v229
    %v328 = vpop.f32.mrf.mxu0
    %v329 = vadd.f32 %v210, %v328
    %v330 = vpop.f32.mrf.mxu0
    %331 = vmatprep.mubr.f32.mxu0 0.0
    %332 = vmatmul.mubr.f32.gmra.mxu0 %v232
    %v333 = vpop.f32.mrf.mxu0
    %v334 = vadd.f32 %v210, %v333
    %v335 = vpop.f32.mrf.mxu0
    %336 = vmatprep.mubr.f32.mxu0 0.0
    %337 = vmatmul.mubr.f32.gmra.mxu0 %v235
    %v338 = vpop.f32.mrf.mxu0
    %v339 = vadd.f32 %v210, %v338
    %v340 = vpop.f32.mrf.mxu0
    %341 = vdwg.mxu0
    %v342 = vmax.f32 %v304, 0.0
    %v343 = vmax.f32 %v309, 0.0
    %v344 = vmax.f32 %v314, 0.0
    %v345 = vmax.f32 %v319, 0.0
    %v346 = vmax.f32 %v324, 0.0
    %v347 = vmax.f32 %v329, 0.0
    %v348 = vmax.f32 %v334, 0.0
    %v349 = vmax.f32 %v339, 0.0
    %v350 = vld [vmem:[%s5] sm:$0xff]
    %v351 = vld [vmem:[%s5 + $0x8] sm:$0xff]
    %v352 = vld [vmem:[%s5 + $0x10] sm:$0xff]
    %v353 = vld [vmem:[%s5 + $0x18] sm:$0xff]
    %v354 = vld [vmem:[%s5 + $0x20] sm:$0xff]
    %v355 = vld [vmem:[%s5 + $0x28] sm:$0xff]
    %v356 = vld [vmem:[%s5 + $0x30] sm:$0xff]
    %v357 = vld [vmem:[%s5 + $0x38] sm:$0xff]
    %v359 = vsel %vm212, %v342, 0
    %v362 = vsel %vm212, %v343, 0
    %v365 = vsel %vm212, %v344, 0
    %v368 = vsel %vm212, %v345, 0
    %v371 = vsel %vm212, %v346, 0
    %v374 = vsel %vm212, %v347, 0
    %v377 = vsel %vm212, %v348, 0
    %v380 = vsel %vm212, %v349, 0
    %382 = vmatprep.subr.mxu0 0.0
    %383 = vmatpush1.msra.mxu0 0.0
    %384 = vmatprep.subr.mxu0 0.0
    %385 = vmatpush1.msra.mxu0 0.0
    %386 = vmatprep.subr.mxu0 0.0
    %387 = vmatpush1.msra.mxu0 0.0
    %388 = vmatprep.subr.mxu0 0.0
    %389 = vmatpush1.msra.mxu0 0.0
    %390 = vmatprep.subr.mxu0 0.0
    %391 = vmatpush1.msra.mxu0 0.0
    %392 = vmatprep.subr.mxu0 0.0
    %393 = vmatpush1.msra.mxu0 0.0
    %394 = vmatprep.subr.mxu0 0.0
    %395 = vmatpush1.msra.mxu0 0.0
    %396 = vmatprep.subr.mxu0 0.0
    %397 = vmatpush1.msra.mxu0 0.0
    %398 = vmatprep.subr.mxu0 0.0
    %399 = vmatpush1.msra.mxu0 %v357
    %400 = vmatprep.subr.mxu0 0.0
    %401 = vmatpush1.msra.mxu0 %v356
    %402 = vmatprep.subr.mxu0 0.0
    %403 = vmatpush1.msra.mxu0 %v355
    %404 = vmatprep.subr.mxu0 0.0
    %405 = vmatpush1.msra.mxu0 %v354
    %406 = vmatprep.subr.mxu0 0.0
    %407 = vmatpush1.msra.mxu0 %v353
    %408 = vmatprep.subr.mxu0 0.0
    %409 = vmatpush1.msra.mxu0 %v352
    %410 = vmatprep.subr.mxu0 0.0
    %411 = vmatpush1.msra.mxu0 %v351
    %412 = vmatprep.subr.mxu0 0.0
    %413 = vmatpush1.msra.mxu0 %v350
    %414 = vmatprep.subr.mxu0 0.0
    %415 = vmatpush2.msra.mxu0 0.0
    %416 = vmatprep.subr.mxu0 0.0
    %417 = vmatpush2.msra.mxu0 0.0
    %418 = vmatprep.subr.mxu0 0.0
    %419 = vmatpush2.msra.mxu0 0.0
    %420 = vmatprep.subr.mxu0 0.0
    %421 = vmatpush2.msra.mxu0 0.0
    %422 = vmatprep.subr.mxu0 0.0
    %423 = vmatpush2.msra.mxu0 0.0
    %424 = vmatprep.subr.mxu0 0.0
    %425 = vmatpush2.msra.mxu0 0.0
    %426 = vmatprep.subr.mxu0 0.0
    %427 = vmatpush2.msra.mxu0 0.0
    %428 = vmatprep.subr.mxu0 0.0
    %429 = vmatpush2.msra.mxu0 0.0
    %430 = vmatprep.subr.mxu0 0.0
    %431 = vmatpush2.msra.mxu0 0.0
    %432 = vmatprep.subr.mxu0 0.0
    %433 = vmatpush2.msra.mxu0 0.0
    %434 = vmatprep.subr.mxu0 0.0
    %435 = vmatpush2.msra.mxu0 0.0
    %436 = vmatprep.subr.mxu0 0.0
    %437 = vmatpush2.msra.mxu0 0.0
    %438 = vmatprep.subr.mxu0 0.0
    %439 = vmatpush2.msra.mxu0 0.0
    %440 = vmatprep.subr.mxu0 0.0
    %441 = vmatpush2.msra.mxu0 0.0
    %442 = vmatprep.subr.mxu0 0.0
    %443 = vmatpush2.msra.mxu0 0.0
    %444 = vmatprep.subr.mxu0 0.0
    %445 = vmatpush2.msra.mxu0 0.0
    %446 = vmatprep.mubr.f32.mxu0 0.0
    %447 = vmatmul.mubr.f32.gmra.mxu0 %v359
    %v448 = vpop.f32.mrf.mxu0
    %v449 = vadd.f32 0.0, %v448
    %v450 = vpop.f32.mrf.mxu0
    %451 = vmatprep.mubr.f32.mxu0 0.0
    %452 = vmatmul.mubr.f32.gmra.mxu0 %v362
    %v453 = vpop.f32.mrf.mxu0
    %v454 = vadd.f32 0.0, %v453
    %v455 = vpop.f32.mrf.mxu0
    %456 = vmatprep.mubr.f32.mxu0 0.0
    %457 = vmatmul.mubr.f32.gmra.mxu0 %v365
    %v458 = vpop.f32.mrf.mxu0
    %v459 = vadd.f32 0.0, %v458
    %v460 = vpop.f32.mrf.mxu0
    %461 = vmatprep.mubr.f32.mxu0 0.0
    %462 = vmatmul.mubr.f32.gmra.mxu0 %v368
    %v463 = vpop.f32.mrf.mxu0
    %v464 = vadd.f32 0.0, %v463
    %v465 = vpop.f32.mrf.mxu0
    %466 = vmatprep.mubr.f32.mxu0 0.0
    %467 = vmatmul.mubr.f32.gmra.mxu0 %v371
    %v468 = vpop.f32.mrf.mxu0
    %v469 = vadd.f32 0.0, %v468
    %v470 = vpop.f32.mrf.mxu0
    %471 = vmatprep.mubr.f32.mxu0 0.0
    %472 = vmatmul.mubr.f32.gmra.mxu0 %v374
    %v473 = vpop.f32.mrf.mxu0
    %v474 = vadd.f32 0.0, %v473
    %v475 = vpop.f32.mrf.mxu0
    %476 = vmatprep.mubr.f32.mxu0 0.0
    %477 = vmatmul.mubr.f32.gmra.mxu0 %v377
    %v478 = vpop.f32.mrf.mxu0
    %v479 = vadd.f32 0.0, %v478
    %v480 = vpop.f32.mrf.mxu0
    %481 = vmatprep.mubr.f32.mxu0 0.0
    %482 = vmatmul.mubr.f32.gmra.mxu0 %v380
    %v483 = vpop.f32.mrf.mxu0
    %v484 = vadd.f32 0.0, %v483
    %v485 = vpop.f32.mrf.mxu0
    %486 = vdwg.mxu0
    %v487 = vld [vmem:[%s6] sm:$0x1]
    %v489 = vlaneseq
    %v490 = vshrl.u32 %v489, 7
    %v491 = vsub.s32 0, %v490
    %v492 = vrot.slane %v487, %v491
    %494 = vmatprep.subr.mxu0 0.0
    %495 = vmatpush1.msra.mxu0 0.0
    %496 = vmatprep.subr.mxu0 0.0
    %497 = vmatpush1.msra.mxu0 0.0
    %498 = vmatprep.subr.mxu0 0.0
    %499 = vmatpush1.msra.mxu0 0.0
    %500 = vmatprep.subr.mxu0 0.0
    %501 = vmatpush1.msra.mxu0 0.0
    %502 = vmatprep.subr.mxu0 0.0
    %503 = vmatpush1.msra.mxu0 0.0
    %504 = vmatprep.subr.mxu0 0.0
    %505 = vmatpush1.msra.mxu0 0.0
    %506 = vmatprep.subr.mxu0 0.0
    %507 = vmatpush1.msra.mxu0 0.0
    %508 = vmatprep.subr.mxu0 0.0
    %509 = vmatpush1.msra.mxu0 0.0
    %510 = vmatprep.subr.mxu0 0.0
    %511 = vmatpush1.msra.mxu0 %v484
    %512 = vmatprep.subr.mxu0 0.0
    %513 = vmatpush1.msra.mxu0 %v479
    %514 = vmatprep.subr.mxu0 0.0
    %515 = vmatpush1.msra.mxu0 %v474
    %516 = vmatprep.subr.mxu0 0.0
    %517 = vmatpush1.msra.mxu0 %v469
    %518 = vmatprep.subr.mxu0 0.0
    %519 = vmatpush1.msra.mxu0 %v464
    %520 = vmatprep.subr.mxu0 0.0
    %521 = vmatpush1.msra.mxu0 %v459
    %522 = vmatprep.subr.mxu0 0.0
    %523 = vmatpush1.msra.mxu0 %v454
    %524 = vmatprep.subr.mxu0 0.0
    %525 = vmatpush1.msra.mxu0 %v449
    %526 = vmatprep.subr.mxu0 0.0
    %527 = vmatpush2.msra.mxu0 0.0
    %528 = vmatprep.subr.mxu0 0.0
    %529 = vmatpush2.msra.mxu0 0.0
    %530 = vmatprep.subr.mxu0 0.0
    %531 = vmatpush2.msra.mxu0 0.0
    %532 = vmatprep.subr.mxu0 0.0
    %533 = vmatpush2.msra.mxu0 0.0
    %534 = vmatprep.subr.mxu0 0.0
    %535 = vmatpush2.msra.mxu0 0.0
    %536 = vmatprep.subr.mxu0 0.0
    %537 = vmatpush2.msra.mxu0 0.0
    %538 = vmatprep.subr.mxu0 0.0
    %539 = vmatpush2.msra.mxu0 0.0
    %540 = vmatprep.subr.mxu0 0.0
    %541 = vmatpush2.msra.mxu0 0.0
    %542 = vmatprep.subr.mxu0 0.0
    %543 = vmatpush2.msra.mxu0 0.0
    %544 = vmatprep.subr.mxu0 0.0
    %545 = vmatpush2.msra.mxu0 0.0
    %546 = vmatprep.subr.mxu0 0.0
    %547 = vmatpush2.msra.mxu0 0.0
    %548 = vmatprep.subr.mxu0 0.0
    %549 = vmatpush2.msra.mxu0 0.0
    %550 = vmatprep.subr.mxu0 0.0
    %551 = vmatpush2.msra.mxu0 0.0
    %552 = vmatprep.subr.mxu0 0.0
    %553 = vmatpush2.msra.mxu0 0.0
    %554 = vmatprep.subr.mxu0 0.0
    %555 = vmatpush2.msra.mxu0 0.0
    %556 = vmatprep.subr.mxu0 0.0
    %557 = vmatpush2.msra.mxu0 0.0
    %558 = vmatprep.mubr.f32.mxu0 0.0
    %559 = vmatmul.mubr.f32.gmra.mxu0 %v214
    %v560 = vpop.f32.mrf.mxu0
    %v561 = vadd.f32 %v492, %v560
    %v562 = vpop.f32.mrf.mxu0
    %563 = vmatprep.mubr.f32.mxu0 0.0
    %564 = vmatmul.mubr.f32.gmra.mxu0 %v217
    %v565 = vpop.f32.mrf.mxu0
    %v566 = vadd.f32 %v492, %v565
    %v567 = vpop.f32.mrf.mxu0
    %568 = vmatprep.mubr.f32.mxu0 0.0
    %569 = vmatmul.mubr.f32.gmra.mxu0 %v220
    %v570 = vpop.f32.mrf.mxu0
    %v571 = vadd.f32 %v492, %v570
    %v572 = vpop.f32.mrf.mxu0
    %573 = vmatprep.mubr.f32.mxu0 0.0
    %574 = vmatmul.mubr.f32.gmra.mxu0 %v223
    %v575 = vpop.f32.mrf.mxu0
    %v576 = vadd.f32 %v492, %v575
    %v577 = vpop.f32.mrf.mxu0
    %578 = vmatprep.mubr.f32.mxu0 0.0
    %579 = vmatmul.mubr.f32.gmra.mxu0 %v226
    %v580 = vpop.f32.mrf.mxu0
    %v581 = vadd.f32 %v492, %v580
    %v582 = vpop.f32.mrf.mxu0
    %583 = vmatprep.mubr.f32.mxu0 0.0
    %584 = vmatmul.mubr.f32.gmra.mxu0 %v229
    %v585 = vpop.f32.mrf.mxu0
    %v586 = vadd.f32 %v492, %v585
    %v587 = vpop.f32.mrf.mxu0
    %588 = vmatprep.mubr.f32.mxu0 0.0
    %589 = vmatmul.mubr.f32.gmra.mxu0 %v232
    %v590 = vpop.f32.mrf.mxu0
    %v591 = vadd.f32 %v492, %v590
    %v592 = vpop.f32.mrf.mxu0
    %593 = vmatprep.mubr.f32.mxu0 0.0
    %594 = vmatmul.mubr.f32.gmra.mxu0 %v235
    %v595 = vpop.f32.mrf.mxu0
    %v596 = vadd.f32 %v492, %v595
    %v597 = vpop.f32.mrf.mxu0
    %598 = vdwg.mxu0
    %v599 = vmax.f32 %v561, 0.0
    %v600 = vmax.f32 %v566, 0.0
    %v601 = vmax.f32 %v571, 0.0
    %v602 = vmax.f32 %v576, 0.0
    %v603 = vmax.f32 %v581, 0.0
    %v604 = vmax.f32 %v586, 0.0
    %v605 = vmax.f32 %v591, 0.0
    %v606 = vmax.f32 %v596, 0.0
    %v607 = vld [vmem:[%s7] sm:$0xff]
    %v608 = vld [vmem:[%s7 + $0x8] sm:$0xff]
    %v609 = vld [vmem:[%s7 + $0x10] sm:$0xff]
    %v610 = vld [vmem:[%s7 + $0x18] sm:$0xff]
    %vm611 = vcmask 261120
    %v613 = vsel %vm611, %v599, 0
    %v616 = vsel %vm611, %v600, 0
    %v619 = vsel %vm611, %v601, 0
    %v622 = vsel %vm611, %v602, 0
    %v625 = vsel %vm611, %v603, 0
    %v628 = vsel %vm611, %v604, 0
    %v631 = vsel %vm611, %v605, 0
    %v634 = vsel %vm611, %v606, 0
    %636 = vmatprep.subr.mxu0 0.0
    %637 = vmatpush1.msra.mxu0 0.0
    %638 = vmatprep.subr.mxu0 0.0
    %639 = vmatpush1.msra.mxu0 0.0
    %640 = vmatprep.subr.mxu0 0.0
    %641 = vmatpush1.msra.mxu0 0.0
    %642 = vmatprep.subr.mxu0 0.0
    %643 = vmatpush1.msra.mxu0 0.0
    %644 = vmatprep.subr.mxu0 0.0
    %645 = vmatpush1.msra.mxu0 0.0
    %646 = vmatprep.subr.mxu0 0.0
    %647 = vmatpush1.msra.mxu0 0.0
    %648 = vmatprep.subr.mxu0 0.0
    %649 = vmatpush1.msra.mxu0 0.0
    %650 = vmatprep.subr.mxu0 0.0
    %651 = vmatpush1.msra.mxu0 0.0
    %652 = vmatprep.subr.mxu0 0.0
    %653 = vmatpush1.msra.mxu0 0.0
    %654 = vmatprep.subr.mxu0 0.0
    %655 = vmatpush1.msra.mxu0 0.0
    %656 = vmatprep.subr.mxu0 0.0
    %657 = vmatpush1.msra.mxu0 0.0
    %658 = vmatprep.subr.mxu0 0.0
    %659 = vmatpush1.msra.mxu0 0.0
    %660 = vmatprep.subr.mxu0 0.0
    %661 = vmatpush1.msra.mxu0 %v610
    %662 = vmatprep.subr.mxu0 0.0
    %663 = vmatpush1.msra.mxu0 %v609
    %664 = vmatprep.subr.mxu0 0.0
    %665 = vmatpush1.msra.mxu0 %v608
    %666 = vmatprep.subr.mxu0 0.0
    %667 = vmatpush1.msra.mxu0 %v607
    %668 = vmatprep.subr.mxu0 0.0
    %669 = vmatpush2.msra.mxu0 0.0
    %670 = vmatprep.subr.mxu0 0.0
    %671 = vmatpush2.msra.mxu0 0.0
    %672 = vmatprep.subr.mxu0 0.0
    %673 = vmatpush2.msra.mxu0 0.0
    %674 = vmatprep.subr.mxu0 0.0
    %675 = vmatpush2.msra.mxu0 0.0
    %676 = vmatprep.subr.mxu0 0.0
    %677 = vmatpush2.msra.mxu0 0.0
    %678 = vmatprep.subr.mxu0 0.0
    %679 = vmatpush2.msra.mxu0 0.0
    %680 = vmatprep.subr.mxu0 0.0
    %681 = vmatpush2.msra.mxu0 0.0
    %682 = vmatprep.subr.mxu0 0.0
    %683 = vmatpush2.msra.mxu0 0.0
    %684 = vmatprep.subr.mxu0 0.0
    %685 = vmatpush2.msra.mxu0 0.0
    %686 = vmatprep.subr.mxu0 0.0
    %687 = vmatpush2.msra.mxu0 0.0
    %688 = vmatprep.subr.mxu0 0.0
    %689 = vmatpush2.msra.mxu0 0.0
    %690 = vmatprep.subr.mxu0 0.0
    %691 = vmatpush2.msra.mxu0 0.0
    %692 = vmatprep.subr.mxu0 0.0
    %693 = vmatpush2.msra.mxu0 0.0
    %694 = vmatprep.subr.mxu0 0.0
    %695 = vmatpush2.msra.mxu0 0.0
    %696 = vmatprep.subr.mxu0 0.0
    %697 = vmatpush2.msra.mxu0 0.0
    %698 = vmatprep.subr.mxu0 0.0
    %699 = vmatpush2.msra.mxu0 0.0
    %700 = vmatprep.mubr.f32.mxu0 0.0
    %701 = vmatmul.mubr.f32.gmra.mxu0 %v613
    %v702 = vpop.f32.mrf.mxu0
    %v703 = vadd.f32 0.0, %v702
    %v704 = vpop.f32.mrf.mxu0
    %705 = vmatprep.mubr.f32.mxu0 0.0
    %706 = vmatmul.mubr.f32.gmra.mxu0 %v616
    %v707 = vpop.f32.mrf.mxu0
    %v708 = vadd.f32 0.0, %v707
    %v709 = vpop.f32.mrf.mxu0
    %710 = vmatprep.mubr.f32.mxu0 0.0
    %711 = vmatmul.mubr.f32.gmra.mxu0 %v619
    %v712 = vpop.f32.mrf.mxu0
    %v713 = vadd.f32 0.0, %v712
    %v714 = vpop.f32.mrf.mxu0
    %715 = vmatprep.mubr.f32.mxu0 0.0
    %716 = vmatmul.mubr.f32.gmra.mxu0 %v622
    %v717 = vpop.f32.mrf.mxu0
    %v718 = vadd.f32 0.0, %v717
    %v719 = vpop.f32.mrf.mxu0
    %720 = vmatprep.mubr.f32.mxu0 0.0
    %721 = vmatmul.mubr.f32.gmra.mxu0 %v625
    %v722 = vpop.f32.mrf.mxu0
    %v723 = vadd.f32 0.0, %v722
    %v724 = vpop.f32.mrf.mxu0
    %725 = vmatprep.mubr.f32.mxu0 0.0
    %726 = vmatmul.mubr.f32.gmra.mxu0 %v628
    %v727 = vpop.f32.mrf.mxu0
    %v728 = vadd.f32 0.0, %v727
    %v729 = vpop.f32.mrf.mxu0
    %730 = vmatprep.mubr.f32.mxu0 0.0
    %731 = vmatmul.mubr.f32.gmra.mxu0 %v631
    %v732 = vpop.f32.mrf.mxu0
    %v733 = vadd.f32 0.0, %v732
    %v734 = vpop.f32.mrf.mxu0
    %735 = vmatprep.mubr.f32.mxu0 0.0
    %736 = vmatmul.mubr.f32.gmra.mxu0 %v634
    %v737 = vpop.f32.mrf.mxu0
    %v738 = vadd.f32 0.0, %v737
    %v739 = vpop.f32.mrf.mxu0
    %740 = vdwg.mxu0
    %v741 = vld [vmem:[%s8] sm:$0x1]
    %v743 = vlaneseq
    %v744 = vshrl.u32 %v743, 7
    %v745 = vsub.s32 0, %v744
    %v746 = vrot.slane %v741, %v745
    %748 = vmatprep.subr.mxu0 0.0
    %749 = vmatpush1.msra.mxu0 0.0
    %750 = vmatprep.subr.mxu0 0.0
    %751 = vmatpush1.msra.mxu0 0.0
    %752 = vmatprep.subr.mxu0 0.0
    %753 = vmatpush1.msra.mxu0 0.0
    %754 = vmatprep.subr.mxu0 0.0
    %755 = vmatpush1.msra.mxu0 0.0
    %756 = vmatprep.subr.mxu0 0.0
    %757 = vmatpush1.msra.mxu0 0.0
    %758 = vmatprep.subr.mxu0 0.0
    %759 = vmatpush1.msra.mxu0 0.0
    %760 = vmatprep.subr.mxu0 0.0
    %761 = vmatpush1.msra.mxu0 0.0
    %762 = vmatprep.subr.mxu0 0.0
    %763 = vmatpush1.msra.mxu0 0.0
    %764 = vmatprep.subr.mxu0 0.0
    %765 = vmatpush1.msra.mxu0 %v738
    %766 = vmatprep.subr.mxu0 0.0
    %767 = vmatpush1.msra.mxu0 %v733
    %768 = vmatprep.subr.mxu0 0.0
    %769 = vmatpush1.msra.mxu0 %v728
    %770 = vmatprep.subr.mxu0 0.0
    %771 = vmatpush1.msra.mxu0 %v723
    %772 = vmatprep.subr.mxu0 0.0
    %773 = vmatpush1.msra.mxu0 %v718
    %774 = vmatprep.subr.mxu0 0.0
    %775 = vmatpush1.msra.mxu0 %v713
    %776 = vmatprep.subr.mxu0 0.0
    %777 = vmatpush1.msra.mxu0 %v708
    %778 = vmatprep.subr.mxu0 0.0
    %779 = vmatpush1.msra.mxu0 %v703
    %780 = vmatprep.subr.mxu0 0.0
    %781 = vmatpush2.msra.mxu0 0.0
    %782 = vmatprep.subr.mxu0 0.0
    %783 = vmatpush2.msra.mxu0 0.0
    %784 = vmatprep.subr.mxu0 0.0
    %785 = vmatpush2.msra.mxu0 0.0
    %786 = vmatprep.subr.mxu0 0.0
    %787 = vmatpush2.msra.mxu0 0.0
    %788 = vmatprep.subr.mxu0 0.0
    %789 = vmatpush2.msra.mxu0 0.0
    %790 = vmatprep.subr.mxu0 0.0
    %791 = vmatpush2.msra.mxu0 0.0
    %792 = vmatprep.subr.mxu0 0.0
    %793 = vmatpush2.msra.mxu0 0.0
    %794 = vmatprep.subr.mxu0 0.0
    %795 = vmatpush2.msra.mxu0 0.0
    %796 = vmatprep.subr.mxu0 0.0
    %797 = vmatpush2.msra.mxu0 0.0
    %798 = vmatprep.subr.mxu0 0.0
    %799 = vmatpush2.msra.mxu0 0.0
    %800 = vmatprep.subr.mxu0 0.0
    %801 = vmatpush2.msra.mxu0 0.0
    %802 = vmatprep.subr.mxu0 0.0
    %803 = vmatpush2.msra.mxu0 0.0
    %804 = vmatprep.subr.mxu0 0.0
    %805 = vmatpush2.msra.mxu0 0.0
    %806 = vmatprep.subr.mxu0 0.0
    %807 = vmatpush2.msra.mxu0 0.0
    %808 = vmatprep.subr.mxu0 0.0
    %809 = vmatpush2.msra.mxu0 0.0
    %810 = vmatprep.subr.mxu0 0.0
    %811 = vmatpush2.msra.mxu0 0.0
    %812 = vmatprep.mubr.f32.mxu0 0.0
    %813 = vmatmul.mubr.f32.gmra.mxu0 %v214
    %v814 = vpop.f32.mrf.mxu0
    %v815 = vadd.f32 %v746, %v814
    %v816 = vpop.f32.mrf.mxu0
    %817 = vmatprep.mubr.f32.mxu0 0.0
    %818 = vmatmul.mubr.f32.gmra.mxu0 %v217
    %v819 = vpop.f32.mrf.mxu0
    %v820 = vadd.f32 %v746, %v819
    %v821 = vpop.f32.mrf.mxu0
    %822 = vmatprep.mubr.f32.mxu0 0.0
    %823 = vmatmul.mubr.f32.gmra.mxu0 %v220
    %v824 = vpop.f32.mrf.mxu0
    %v825 = vadd.f32 %v746, %v824
    %v826 = vpop.f32.mrf.mxu0
    %827 = vmatprep.mubr.f32.mxu0 0.0
    %828 = vmatmul.mubr.f32.gmra.mxu0 %v223
    %v829 = vpop.f32.mrf.mxu0
    %v830 = vadd.f32 %v746, %v829
    %v831 = vpop.f32.mrf.mxu0
    %832 = vmatprep.mubr.f32.mxu0 0.0
    %833 = vmatmul.mubr.f32.gmra.mxu0 %v226
    %v834 = vpop.f32.mrf.mxu0
    %v835 = vadd.f32 %v746, %v834
    %v836 = vpop.f32.mrf.mxu0
    %837 = vmatprep.mubr.f32.mxu0 0.0
    %838 = vmatmul.mubr.f32.gmra.mxu0 %v229
    %v839 = vpop.f32.mrf.mxu0
    %v840 = vadd.f32 %v746, %v839
    %v841 = vpop.f32.mrf.mxu0
    %842 = vmatprep.mubr.f32.mxu0 0.0
    %843 = vmatmul.mubr.f32.gmra.mxu0 %v232
    %v844 = vpop.f32.mrf.mxu0
    %v845 = vadd.f32 %v746, %v844
    %v846 = vpop.f32.mrf.mxu0
    %847 = vmatprep.mubr.f32.mxu0 0.0
    %848 = vmatmul.mubr.f32.gmra.mxu0 %v235
    %v849 = vpop.f32.mrf.mxu0
    %v850 = vadd.f32 %v746, %v849
    %v851 = vpop.f32.mrf.mxu0
    %852 = vdwg.mxu0
    %v853 = vmax.f32 %v815, 0.0
    %v854 = vmax.f32 %v820, 0.0
    %v855 = vmax.f32 %v825, 0.0
    %v856 = vmax.f32 %v830, 0.0
    %v857 = vmax.f32 %v835, 0.0
    %v858 = vmax.f32 %v840, 0.0
    %v859 = vmax.f32 %v845, 0.0
    %v860 = vmax.f32 %v850, 0.0
    %v861 = vld [vmem:[#allocation2] sm:$0xff]
    %v863 = vsel %vm212, %v861, 0
    %865 = vmatprep.subr.mxu0 0.0
    %866 = vmatpush1.msra.mxu0 0.0
    %867 = vmatprep.subr.mxu0 0.0
    %868 = vmatpush1.msra.mxu0 0.0
    %869 = vmatprep.subr.mxu0 0.0
    %870 = vmatpush1.msra.mxu0 0.0
    %871 = vmatprep.subr.mxu0 0.0
    %872 = vmatpush1.msra.mxu0 0.0
    %873 = vmatprep.subr.mxu0 0.0
    %874 = vmatpush1.msra.mxu0 0.0
    %875 = vmatprep.subr.mxu0 0.0
    %876 = vmatpush1.msra.mxu0 0.0
    %877 = vmatprep.subr.mxu0 0.0
    %878 = vmatpush1.msra.mxu0 0.0
    %879 = vmatprep.subr.mxu0 0.0
    %880 = vmatpush1.msra.mxu0 0.0
    %881 = vmatprep.subr.mxu0 0.0
    %882 = vmatpush1.msra.mxu0 %v860
    %883 = vmatprep.subr.mxu0 0.0
    %884 = vmatpush1.msra.mxu0 %v859
    %885 = vmatprep.subr.mxu0 0.0
    %886 = vmatpush1.msra.mxu0 %v858
    %887 = vmatprep.subr.mxu0 0.0
    %888 = vmatpush1.msra.mxu0 %v857
    %889 = vmatprep.subr.mxu0 0.0
    %890 = vmatpush1.msra.mxu0 %v856
    %891 = vmatprep.subr.mxu0 0.0
    %892 = vmatpush1.msra.mxu0 %v855
    %893 = vmatprep.subr.mxu0 0.0
    %894 = vmatpush1.msra.mxu0 %v854
    %895 = vmatprep.subr.mxu0 0.0
    %896 = vmatpush1.msra.mxu0 %v853
    %897 = vmatprep.subr.mxu0 0.0
    %898 = vmatpush2.msra.mxu0 0.0
    %899 = vmatprep.subr.mxu0 0.0
    %900 = vmatpush2.msra.mxu0 0.0
    %901 = vmatprep.subr.mxu0 0.0
    %902 = vmatpush2.msra.mxu0 0.0
    %903 = vmatprep.subr.mxu0 0.0
    %904 = vmatpush2.msra.mxu0 0.0
    %905 = vmatprep.subr.mxu0 0.0
    %906 = vmatpush2.msra.mxu0 0.0
    %907 = vmatprep.subr.mxu0 0.0
    %908 = vmatpush2.msra.mxu0 0.0
    %909 = vmatprep.subr.mxu0 0.0
    %910 = vmatpush2.msra.mxu0 0.0
    %911 = vmatprep.subr.mxu0 0.0
    %912 = vmatpush2.msra.mxu0 0.0
    %913 = vmatprep.subr.mxu0 0.0
    %914 = vmatpush2.msra.mxu0 0.0
    %915 = vmatprep.subr.mxu0 0.0
    %916 = vmatpush2.msra.mxu0 0.0
    %917 = vmatprep.subr.mxu0 0.0
    %918 = vmatpush2.msra.mxu0 0.0
    %919 = vmatprep.subr.mxu0 0.0
    %920 = vmatpush2.msra.mxu0 0.0
    %921 = vmatprep.subr.mxu0 0.0
    %922 = vmatpush2.msra.mxu0 0.0
    %923 = vmatprep.subr.mxu0 0.0
    %924 = vmatpush2.msra.mxu0 0.0
    %925 = vmatprep.subr.mxu0 0.0
    %926 = vmatpush2.msra.mxu0 0.0
    %927 = vmatprep.subr.mxu0 0.0
    %928 = vmatpush2.msra.mxu0 0.0
    %929 = vmatprep.mubr.f32.mxu0 0.0
    %930 = vmatmul.mubr.f32.gmra.mxu0 %v863
    %v931 = vpop.f32.mrf.mxu0
    %v932 = vadd.f32 0.0, %v931
    %v933 = vpop.f32.mrf.mxu0
    %934 = vdwg.mxu0
    %v935 = vld [vmem:[%s9] sm:$0xff]
    %v936 = vld [vmem:[%s9 + $0x8] sm:$0xff]
    %v937 = vld [vmem:[%s9 + $0x10] sm:$0xff]
    %v938 = vld [vmem:[%s9 + $0x18] sm:$0xff]
    %v939 = vld [vmem:[%s10] sm:$0x1]
    %v941 = vlaneseq
    %v942 = vshrl.u32 %v941, 7
    %v943 = vsub.s32 0, %v942
    %v944 = vrot.slane %v939, %v943
    %v947 = vsel %vm611, %v932, 0
    %949 = vmatprep.subr.mxu0 0.0
    %950 = vmatpush1.msra.mxu0 0.0
    %951 = vmatprep.subr.mxu0 0.0
    %952 = vmatpush1.msra.mxu0 0.0
    %953 = vmatprep.subr.mxu0 0.0
    %954 = vmatpush1.msra.mxu0 0.0
    %955 = vmatprep.subr.mxu0 0.0
    %956 = vmatpush1.msra.mxu0 0.0
    %957 = vmatprep.subr.mxu0 0.0
    %958 = vmatpush1.msra.mxu0 0.0
    %959 = vmatprep.subr.mxu0 0.0
    %960 = vmatpush1.msra.mxu0 0.0
    %961 = vmatprep.subr.mxu0 0.0
    %962 = vmatpush1.msra.mxu0 0.0
    %963 = vmatprep.subr.mxu0 0.0
    %964 = vmatpush1.msra.mxu0 0.0
    %965 = vmatprep.subr.mxu0 0.0
    %966 = vmatpush1.msra.mxu0 0.0
    %967 = vmatprep.subr.mxu0 0.0
    %968 = vmatpush1.msra.mxu0 0.0
    %969 = vmatprep.subr.mxu0 0.0
    %970 = vmatpush1.msra.mxu0 0.0
    %971 = vmatprep.subr.mxu0 0.0
    %972 = vmatpush1.msra.mxu0 0.0
    %973 = vmatprep.subr.mxu0 0.0
    %974 = vmatpush1.msra.mxu0 %v938
    %975 = vmatprep.subr.mxu0 0.0
    %976 = vmatpush1.msra.mxu0 %v937
    %977 = vmatprep.subr.mxu0 0.0
    %978 = vmatpush1.msra.mxu0 %v936
    %979 = vmatprep.subr.mxu0 0.0
    %980 = vmatpush1.msra.mxu0 %v935
    %981 = vmatprep.subr.mxu0 0.0
    %982 = vmatpush2.msra.mxu0 0.0
    %983 = vmatprep.subr.mxu0 0.0
    %984 = vmatpush2.msra.mxu0 0.0
    %985 = vmatprep.subr.mxu0 0.0
    %986 = vmatpush2.msra.mxu0 0.0
    %987 = vmatprep.subr.mxu0 0.0
    %988 = vmatpush2.msra.mxu0 0.0
    %989 = vmatprep.subr.mxu0 0.0
    %990 = vmatpush2.msra.mxu0 0.0
    %991 = vmatprep.subr.mxu0 0.0
    %992 = vmatpush2.msra.mxu0 0.0
    %993 = vmatprep.subr.mxu0 0.0
    %994 = vmatpush2.msra.mxu0 0.0
    %995 = vmatprep.subr.mxu0 0.0
    %996 = vmatpush2.msra.mxu0 0.0
    %997 = vmatprep.subr.mxu0 0.0
    %998 = vmatpush2.msra.mxu0 0.0
    %999 = vmatprep.subr.mxu0 0.0
    %1000 = vmatpush2.msra.mxu0 0.0
    %1001 = vmatprep.subr.mxu0 0.0
    %1002 = vmatpush2.msra.mxu0 0.0
    %1003 = vmatprep.subr.mxu0 0.0
    %1004 = vmatpush2.msra.mxu0 0.0
    %1005 = vmatprep.subr.mxu0 0.0
    %1006 = vmatpush2.msra.mxu0 0.0
    %1007 = vmatprep.subr.mxu0 0.0
    %1008 = vmatpush2.msra.mxu0 0.0
    %1009 = vmatprep.subr.mxu0 0.0
    %1010 = vmatpush2.msra.mxu0 0.0
    %1011 = vmatprep.subr.mxu0 0.0
    %1012 = vmatpush2.msra.mxu0 0.0
    %1013 = vmatprep.mubr.f32.mxu0 0.0
    %1014 = vmatmul.mubr.f32.gmra.mxu0 %v947
    %v1015 = vpop.f32.mrf.mxu0
    %v1016 = vadd.f32 %v944, %v1015
    %v1017 = vpop.f32.mrf.mxu0
    %1018 = vdwg.mxu0
    %v1019 = vmax.f32 %v1016, 0.0
    %v1020 = vld [vmem:[%s11] sm:$0xff]
    %v1021 = vld [vmem:[%s11 + $0x8] sm:$0xff]
    %v1022 = vld [vmem:[%s11 + $0x10] sm:$0xff]
    %v1023 = vld [vmem:[%s11 + $0x18] sm:$0xff]
    %v1024 = vld [vmem:[%s12] sm:$0x1]
    %v1026 = vlaneseq
    %v1027 = vshrl.u32 %v1026, 7
    %v1028 = vsub.s32 0, %v1027
    %v1029 = vrot.slane %v1024, %v1028
    %v1032 = vsel %vm611, %v1019, 0
    %1034 = vmatprep.subr.mxu0 0.0
    %1035 = vmatpush1.msra.mxu0 0.0
    %1036 = vmatprep.subr.mxu0 0.0
    %1037 = vmatpush1.msra.mxu0 0.0
    %1038 = vmatprep.subr.mxu0 0.0
    %1039 = vmatpush1.msra.mxu0 0.0
    %1040 = vmatprep.subr.mxu0 0.0
    %1041 = vmatpush1.msra.mxu0 0.0
    %1042 = vmatprep.subr.mxu0 0.0
    %1043 = vmatpush1.msra.mxu0 0.0
    %1044 = vmatprep.subr.mxu0 0.0
    %1045 = vmatpush1.msra.mxu0 0.0
    %1046 = vmatprep.subr.mxu0 0.0
    %1047 = vmatpush1.msra.mxu0 0.0
    %1048 = vmatprep.subr.mxu0 0.0
    %1049 = vmatpush1.msra.mxu0 0.0
    %1050 = vmatprep.subr.mxu0 0.0
    %1051 = vmatpush1.msra.mxu0 0.0
    %1052 = vmatprep.subr.mxu0 0.0
    %1053 = vmatpush1.msra.mxu0 0.0
    %1054 = vmatprep.subr.mxu0 0.0
    %1055 = vmatpush1.msra.mxu0 0.0
    %1056 = vmatprep.subr.mxu0 0.0
    %1057 = vmatpush1.msra.mxu0 0.0
    %1058 = vmatprep.subr.mxu0 0.0
    %1059 = vmatpush1.msra.mxu0 %v1023
    %1060 = vmatprep.subr.mxu0 0.0
    %1061 = vmatpush1.msra.mxu0 %v1022
    %1062 = vmatprep.subr.mxu0 0.0
    %1063 = vmatpush1.msra.mxu0 %v1021
    %1064 = vmatprep.subr.mxu0 0.0
    %1065 = vmatpush1.msra.mxu0 %v1020
    %1066 = vmatprep.subr.mxu0 0.0
    %1067 = vmatpush2.msra.mxu0 0.0
    %1068 = vmatprep.subr.mxu0 0.0
    %1069 = vmatpush2.msra.mxu0 0.0
    %1070 = vmatprep.subr.mxu0 0.0
    %1071 = vmatpush2.msra.mxu0 0.0
    %1072 = vmatprep.subr.mxu0 0.0
    %1073 = vmatpush2.msra.mxu0 0.0
    %1074 = vmatprep.subr.mxu0 0.0
    %1075 = vmatpush2.msra.mxu0 0.0
    %1076 = vmatprep.subr.mxu0 0.0
    %1077 = vmatpush2.msra.mxu0 0.0
    %1078 = vmatprep.subr.mxu0 0.0
    %1079 = vmatpush2.msra.mxu0 0.0
    %1080 = vmatprep.subr.mxu0 0.0
    %1081 = vmatpush2.msra.mxu0 0.0
    %1082 = vmatprep.subr.mxu0 0.0
    %1083 = vmatpush2.msra.mxu0 0.0
    %1084 = vmatprep.subr.mxu0 0.0
    %1085 = vmatpush2.msra.mxu0 0.0
    %1086 = vmatprep.subr.mxu0 0.0
    %1087 = vmatpush2.msra.mxu0 0.0
    %1088 = vmatprep.subr.mxu0 0.0
    %1089 = vmatpush2.msra.mxu0 0.0
    %1090 = vmatprep.subr.mxu0 0.0
    %1091 = vmatpush2.msra.mxu0 0.0
    %1092 = vmatprep.subr.mxu0 0.0
    %1093 = vmatpush2.msra.mxu0 0.0
    %1094 = vmatprep.subr.mxu0 0.0
    %1095 = vmatpush2.msra.mxu0 0.0
    %1096 = vmatprep.subr.mxu0 0.0
    %1097 = vmatpush2.msra.mxu0 0.0
    %1098 = vmatprep.mubr.f32.mxu0 0.0
    %1099 = vmatmul.mubr.f32.gmra.mxu0 %v1032
    %v1100 = vpop.f32.mrf.mxu0
    %v1101 = vadd.f32 %v1029, %v1100
    %v1102 = vpop.f32.mrf.mxu0
    %1103 = vdwg.mxu0
    %1104 = vmax.xlane.f32.xlu0 %v1101
    %v1105 = vpop.xlane.xlu0 %1104
    %v1106 = vsub.f32 %v1101, %v1105
    %v1107 = vmul.f32 %v1106, 1.442695
    %v1108 = vpow.pop %v1107
    %1109 = vadd.xlane.f32.xlu0 %v1108
    %v1110 = vpop.xlane.xlu0 %1109
    %v1111 = vlog2.pop %v1110
    %v1112 = vmul.f32 %v1111, 0.6931472
    %v1113 = vsub.f32 %v1106, %v1112
    %1114 = vst [vmem:[#allocation5] sm:$0xff] %v1113
    // Predicated region
    $region58: #{tpu_custom_call.1} parent=1 // pred_check
      _
    $region59: #{tpu_custom_call.1} parent=1 // pred_check_branch
      %1116 = sbr.rel (0) target = $region61
    $region60: #{tpu_custom_call.1} parent=1 // pred_region
      %s1118 = ssub.s32 128, 128
      %1119 = vsyncadd [#allocation4], %s1118
      %s1121 = sshll.u32 [#allocation5], 4
      %s1122 = int_to_ptr.vmem [resolvable:$true] %s1121
      %1124 = dma.vmem_to_hbm [thread:$0]  %s1122, 128, %s13, [#allocation4]
    $region61: #{tpu_custom_call.1} parent=1 // pred_fallthru
      _
    // Predicated region
    $region62: #{tpu_custom_call.1} parent=1 // pred_check
      _
    $region63: #{tpu_custom_call.1} parent=1 // pred_check_branch
      %1126 = sbr.rel (0) target = $region65
    $region64: #{tpu_custom_call.1} parent=1 // pred_region
      %1127 = dma.done [#allocation4], 128
    $region65: #{tpu_custom_call.1} parent=1 // pred_fallthru
      _
    %1128 = vsyncpa [#allocation3], 1
    %1129 = vsyncpa [#allocation4], 1

</llo_original>
